<compile_context>
chip_gen: v5e
topology: v5e:2x2
jax: 0.10.0
libtpu: 0.0.40
codegen_flags: <defaults>
</compile_context>

<pallas_src>
import functools

import jax
import jax.numpy as jnp
from jax import lax
from jax.experimental import pallas as pl
from jax.experimental.pallas import tpu as pltpu


# ----------------------------------------------------------------------------
# Kernel bodies
# ----------------------------------------------------------------------------
def _bce_elem(x, y, w, hard_labels):
    """Per-element BCE in f32.  x, y are f32 tiles; w is None, (R,1), (1,C) or (R,C)."""
    if hard_labels:
        # Opt-in fast path for hard {0,1} labels: one log per element (halves
        # EUP transcendental pushes; relevant on v7x with bf16 inputs).
        p = jnp.where(y >= 0.5, x, 1.0 - x)
        loss = -jnp.maximum(jnp.log(p), jnp.float32(-100.0))
    else:
        # Exact PyTorch semantics (soft labels supported): clamp logs at -100.
        log_x = jnp.maximum(jnp.log(x), jnp.float32(-100.0))
        log_1mx = jnp.maximum(jnp.log1p(-x), jnp.float32(-100.0))
        loss = -(y * log_x + (1.0 - y) * log_1mx)
    if w is not None:
        loss = loss * w          # (R,1)/(1,C) weights broadcast on the VPU
    return loss


def _bce_partial_sum_kernel(*refs, has_weight, n_rows, n_cols, block_rows,
                            block_cols, mask_rows, mask_cols, hard_labels):
    """Each grid cell writes its block's partial sum into a private (8,128) slab."""
    if has_weight:
        x_ref, y_ref, w_ref, out_ref = refs
        w = w_ref[...].astype(jnp.float32)
    else:
        x_ref, y_ref, out_ref = refs
        w = None

    x = x_ref[...].astype(jnp.float32)
    y = y_ref[...].astype(jnp.float32)
    loss = _bce_elem(x, y, w, hard_labels)

    if mask_rows or mask_cols:
        # Only edge blocks pay for the iota/compare/select; interior blocks
        # take the plain-sum branch at runtime (scalar-valued lax.cond).
        i = pl.program_id(0)
        j = pl.program_id(1)
        is_edge = None
        if mask_rows:
            is_edge = (i == pl.num_programs(0) - 1)
        if mask_cols:
            ec = (j == pl.num_programs(1) - 1)
            is_edge = ec if is_edge is None else (is_edge | ec)

        def _sum_masked():
            valid = None
            if mask_rows:
                rows = lax.broadcasted_iota(jnp.int32, (block_rows, block_cols), 0)
                vr = (rows + i * block_rows) < n_rows
                valid = vr
            if mask_cols:
                cols = lax.broadcasted_iota(jnp.int32, (block_rows, block_cols), 1)
                vc = (cols + j * block_cols) < n_cols
                valid = vc if valid is None else (valid & vc)
            return jnp.sum(jnp.where(valid, loss, jnp.float32(0.0)))

        def _sum_plain():
            return jnp.sum(loss)

        part = lax.cond(is_edge, _sum_masked, _sum_plain)
    else:
        part = jnp.sum(loss)

    # Lane-dense, unmasked store: scalar lands at [0,0], rest of slab is zero,
    # so the wrapper's jnp.sum over all slabs recovers the total.
    r = lax.broadcasted_iota(jnp.int32, (8, 128), 0)
    c = lax.broadcasted_iota(jnp.int32, (8, 128), 1)
    out_ref[...] = jnp.where((r == 0) & (c == 0), part, jnp.float32(0.0))


def _bce_elementwise_kernel(*refs, has_weight, hard_labels):
    """reduce=False path: write the per-element loss map."""
    if has_weight:
        x_ref, y_ref, w_ref, out_ref = refs
        w = w_ref[...].astype(jnp.float32)
    else:
        x_ref, y_ref, out_ref = refs
        w = None
    loss = _bce_elem(x_ref[...].astype(jnp.float32),
                     y_ref[...].astype(jnp.float32), w, hard_labels)
    out_ref[...] = loss.astype(out_ref.dtype)


# ----------------------------------------------------------------------------
# Tiling helpers
# ----------------------------------------------------------------------------
def _round_up(x, m):
    return ((x + m - 1) // m) * m


def _sublane_multiple(dtype):
    """Native sublane packing: 8 rows for 4-byte, 16 for 2-byte, 32 for 1-byte."""
    itemsize = jnp.dtype(dtype).itemsize
    return max(8, 32 // max(1, itemsize))


def _vmem_and_target(num_streams):
    """(vmem_limit_bytes, per-stream target tile bytes) — generation aware."""
    try:
        vmem_phys = int(pltpu.get_tpu_info().vmem_capacity_bytes)
    except Exception:
        vmem_phys = 64 * 1024 * 1024          # conservative: assume v7x-sized VMEM
    if vmem_phys >= 128 * 1024 * 1024:        # v5e / v6e: plenty of headroom
        return 64 * 1024 * 1024, 4 * 1024 * 1024
    # v7x (64 MiB per TC): keep 32 MiB scoped; smaller tiles if a 3rd stream.
    target = 2 * 1024 * 1024 if num_streams >= 3 else 3 * 1024 * 1024
    return 32 * 1024 * 1024, target


def _flat_cols(n_elem):
    """Lane width for the lane-dense flat layout, minimizing tail padding."""
    if n_elem <= 128:
        return 128
    best = None
    for cand in (2048, 1024, 512, 256, 128):
        waste = (-n_elem) % cand
        if best is None or waste < best[0]:
            best = (waste, cand)
    return best[1]


def _choose_block(n_rows, n_cols, sub_m, target_bytes):
    """Pick an (rows, cols) tile of ~target_bytes (f32-equivalent), lane-dense."""
    if n_cols <= 2048:
        block_cols = n_cols                       # full minor dim (always legal)
    else:
        best = None
        for cand in (2048, 1024, 512):            # minimize last-block waste
            waste = (-n_cols) % cand
            if best is None or waste < best[0]:
                best = (waste, cand)
        block_cols = best[1]
    bytes_per_row = 4 * block_cols
    max_rows = max(sub_m, ((target_bytes // bytes_per_row) // sub_m) * sub_m)
    block_rows = n_rows if n_rows <= max_rows else max_rows
    return block_rows, block_cols


def _ensure_multi_block(n_rows, n_cols, block_rows, block_cols, sub_m):
    """Guarantee >=2 grid cells when possible so both v7x TCs are used."""
    if pl.cdiv(n_rows, block_rows) * pl.cdiv(n_cols, block_cols) > 1:
        return block_rows, block_cols
    if n_rows >= 2 * sub_m:
        half = _round_up(pl.cdiv(n_rows, 2), sub_m)
        if half < n_rows:
            return half, block_cols
    if block_cols >= 256 and block_cols % 256 == 0:
        return block_rows, block_cols // 2
    if block_cols == n_cols and n_cols >= 256:
        return block_rows, _round_up(pl.cdiv(n_cols, 2), 128)
    return block_rows, block_cols


# ----------------------------------------------------------------------------
# Wrapper
# ----------------------------------------------------------------------------
def bce_loss(inp, target, weight=None, *, size_average=True, reduce=True,
             hard_labels=False, block_shape=None):
    """Pallas TPU BCELoss forward.  inp/target: same shape, values in [0, 1]."""
    assert inp.shape == target.shape, "input and target must have the same shape"
    orig_shape = tuple(int(s) for s in inp.shape)
    assert len(orig_shape) >= 1 and all(s > 0 for s in orig_shape)

    n_rows0 = orig_shape[0]
    n_cols0 = 1
    for s in orig_shape[1:]:
        n_cols0 *= s
    n_elem = n_rows0 * n_cols0

    has_weight = weight is not None
    padded_wshape = None
    if has_weight:
        weight = jnp.asarray(weight, dtype=jnp.float32)
        if jnp.broadcast_shapes(orig_shape, tuple(weight.shape)) != orig_shape:
            raise ValueError("weight must be broadcastable to the input shape")
        padded_wshape = (1,) * (len(orig_shape) - weight.ndim) + tuple(weight.shape)

    sub_m = _sublane_multiple(inp.dtype)

    # Lane-dense re-flattening for small minor dims (1-D / (N,1) BCE case).
    # With a weight the flat layout needs a full-size weight stream, so only
    # flatten when the lane-utilization loss clearly dominates that cost.
    use_flat = (n_cols0 < 128) and ((not has_weight) or n_cols0 <= 32)

    if use_flat:
        cols = _flat_cols(n_elem)
        rows = pl.cdiv(n_elem, cols)
        n_pad = rows * cols

        def _flat(a):
            a = a.reshape(-1)
            if n_pad > n_elem:
                a = jnp.pad(a, (0, n_pad - n_elem))   # zero pad -> loss 0 exactly
            return a.reshape(rows, cols)

        n_rows, n_cols = rows, cols
        inputs = [_flat(inp), _flat(target)]
        w_kind = None
        if has_weight:
            inputs.append(_flat(jnp.broadcast_to(weight, orig_shape).astype(jnp.float32)))
            w_kind = "full"
    else:
        n_rows, n_cols = n_rows0, n_cols0
        inputs = [inp.reshape(n_rows, n_cols), target.reshape(n_rows, n_cols)]
        w_kind = None
        if has_weight:
            if all(d == 1 for d in padded_wshape[1:]):
                # Per-batch weight (documented BCELoss case): stream as (N, 1).
                w2 = jnp.broadcast_to(weight.reshape(padded_wshape[0], 1), (n_rows, 1))
                w_kind = "row"
            elif padded_wshape[0] == 1:
                # Per-feature / (1, *) weight: stream unexpanded as (1, D).
                w2 = jnp.broadcast_to(weight, (1,) + orig_shape[1:]).reshape(1, n_cols)
                w_kind = "col"
            else:
                # Fully general broadcastable weight: full (N, D) stream.
                w2 = jnp.broadcast_to(weight, orig_shape).reshape(n_rows, n_cols)
                w_kind = "full"
            inputs.append(w2)

    num_streams = 2 + (1 if w_kind == "full" else 0)
    vmem_limit, target_bytes = _vmem_and_target(num_streams)

    if block_shape is None:
        block_rows, block_cols = _choose_block(n_rows, n_cols, sub_m, target_bytes)
        block_rows, block_cols = _ensure_multi_block(
            n_rows, n_cols, block_rows, block_cols, sub_m)
    else:
        block_rows, block_cols = block_shape

    num_i = pl.cdiv(n_rows, block_rows)
    num_j = pl.cdiv(n_cols, block_cols)
    grid = (num_i, num_j)
    mask_rows = (n_rows % block_rows) != 0
    mask_cols = (n_cols % block_cols) != 0

    tile_spec = pl.BlockSpec((block_rows, block_cols), lambda i, j: (i, j))
    in_specs = [tile_spec, tile_spec]
    if w_kind == "row":
        in_specs.append(pl.BlockSpec((block_rows, 1), lambda i, j: (i, 0)))
    elif w_kind == "col":
        in_specs.append(pl.BlockSpec((1, block_cols), lambda i, j: (0, j)))
    elif w_kind == "full":
        in_specs.append(tile_spec)

    compiler_params = pltpu.CompilerParams(
        dimension_semantics=("parallel", "parallel"),   # megacore-splittable grid
        vmem_limit_bytes=vmem_limit,
    )

    in_bytes = sum(int(a.size) * jnp.dtype(a.dtype).itemsize for a in inputs)
    transc = (1 if hard_labels else 2) * n_elem
    has_w = w_kind is not None

    if not reduce:
        kernel = functools.partial(_bce_elementwise_kernel,
                                   has_weight=has_w, hard_labels=hard_labels)
        out2 = pl.pallas_call(
            kernel,
            out_shape=jax.ShapeDtypeStruct((n_rows, n_cols), inp.dtype),
            grid=grid,
            in_specs=in_specs,
            out_specs=tile_spec,
            compiler_params=compiler_params,
            cost_estimate=pl.CostEstimate(
                flops=7 * n_elem, transcendentals=transc,
                bytes_accessed=in_bytes + n_rows * n_cols * jnp.dtype(inp.dtype).itemsize),
        )(*inputs)
        if use_flat:
            return out2.reshape(-1)[:n_elem].reshape(orig_shape)
        return out2.reshape(orig_shape)

    kernel = functools.partial(
        _bce_partial_sum_kernel,
        has_weight=has_w, n_rows=n_rows, n_cols=n_cols,
        block_rows=block_rows, block_cols=block_cols,
        mask_rows=mask_rows, mask_cols=mask_cols, hard_labels=hard_labels)

    partials = pl.pallas_call(
        kernel,
        out_shape=jax.ShapeDtypeStruct((num_i * 8, num_j * 128), jnp.float32),
        grid=grid,
        in_specs=in_specs,
        out_specs=pl.BlockSpec((8, 128), lambda i, j: (i, j)),
        compiler_params=compiler_params,
        cost_estimate=pl.CostEstimate(
            flops=7 * n_elem, transcendentals=transc,
            bytes_accessed=in_bytes + num_i * num_j * 8 * 128 * 4),
    )(*inputs)

    total = jnp.sum(partials)   # tiny (num_blocks-sized) pairwise XLA reduce
    if size_average:
        return total / jnp.float32(n_elem)
    return total


# ----------------------------------------------------------------------------
# Pure-JAX reference
# ----------------------------------------------------------------------------
def _bce_ref(inp, target, weight=None, size_average=True, reduce=True):
    x = inp.astype(jnp.float32)
    y = target.astype(jnp.float32)
    log_x = jnp.maximum(jnp.log(x), -100.0)
    log_1mx = jnp.maximum(jnp.log1p(-x), -100.0)
    l = -(y * log_x + (1.0 - y) * log_1mx)
    if weight is not None:
        l = l * jnp.broadcast_to(jnp.asarray(weight, jnp.float32), l.shape)
    if not reduce:
        return l
    return jnp.mean(l) if size_average else jnp.sum(l)


if __name__ == "__main__":
    key = jax.random.PRNGKey(0)
    k1, k2, k3, k4, k5, k6 = jax.random.split(key, 6)

    # Case 1: 1-D sentence-embedding-style scores (N,), per-batch weight, mean.
    # Exercises the lane-dense flat layout (old layout was (37,1): 1/128 lanes).
    N1 = 37
    x1 = jax.nn.sigmoid(jax.random.normal(k1, (N1,), dtype=jnp.float32))
    t1 = (jax.random.uniform(k2, (N1,)) > 0.5).astype(jnp.float32)
    w1 = jnp.linspace(0.5, 2.0, N1, dtype=jnp.float32)
    out1 = jax.block_until_ready(bce_loss(x1, t1, weight=w1))
    ref1 = _bce_ref(x1, t1, weight=w1)
    assert jnp.allclose(out1, ref1, rtol=1e-5, atol=1e-6), (out1, ref1)

    # Case 2: default BCELoss() (weight=None, mean), (16, 256) f32 soft labels.
    # Exercises the >=2-grid-cell split (megacore) path.
    N2, D2 = 16, 256
    x2 = jax.nn.sigmoid(jax.random.normal(k3, (N2, D2), dtype=jnp.float32))
    t2 = jax.random.uniform(k4, (N2, D2), dtype=jnp.float32)
    out2 = jax.block_until_ready(bce_loss(x2, t2))
    ref2 = _bce_ref(x2, t2)
    assert jnp.allclose(out2, ref2, rtol=1e-5, atol=1e-6), (out2, ref2)

    # Case 3: reduce=False per-element loss map.
    out3 = jax.block_until_ready(bce_loss(x2, t2, reduce=False))
    ref3 = _bce_ref(x2, t2, reduce=False)
    assert out3.shape == (N2, D2)
    assert jnp.allclose(out3, ref3, rtol=1e-5, atol=1e-5)

    # Case 4: bf16 inputs, per-feature (D,) weight, sum reduction.
    # Exercises the unexpanded (1,D) weight stream, edge-block-only masking and
    # dtype-aware sublane blocking.
    N4, D4 = 24, 384
    x4 = jax.nn.sigmoid(jax.random.normal(k5, (N4, D4))).astype(jnp.bfloat16)
    t4 = (jax.random.uniform(k6, (N4, D4)) > 0.5).astype(jnp.bfloat16)
    w4 = jnp.linspace(0.25, 1.75, D4, dtype=jnp.float32)
    out4 = jax.block_until_ready(bce_loss(x4, t4, weight=w4, size_average=False))
    ref4 = _bce_ref(x4, t4, weight=w4, size_average=False)
    assert jnp.allclose(out4, ref4, rtol=2e-3, atol=1e-2), (out4, ref4)

    print("KERNEL_OK")
</pallas_src>

<mosaic_0001>
module attributes {stable_mosaic.version = 11 : i64} {
  func.func @_bce_partial_sum_kernel(%arg0: i32, %arg1: i32, %arg2: memref<1x128xf32, #tpu.memory_space<vmem>>, %arg3: memref<1x128xf32, #tpu.memory_space<vmem>>, %arg4: memref<1x128xf32, #tpu.memory_space<vmem>>, %arg5: memref<8x128xf32, #tpu.memory_space<vmem>>) attributes {dimension_semantics = [#tpu.dimension_semantics<parallel>, #tpu.dimension_semantics<parallel>], iteration_bounds = array<i64: 1, 1>, scalar_prefetch = 0 : i64, scratch_operands = 0 : i64, tpu.core_type = #tpu.core_type<tc>, window_params = [{transform_indices = @transform_0, window_bounds = array<i64: 1, 128>}, {transform_indices = @transform_1, window_bounds = array<i64: 1, 128>}, {transform_indices = @transform_2, window_bounds = array<i64: 1, 128>}, {transform_indices = @transform_3, window_bounds = array<i64: 8, 128>}]} {
    %c0 = arith.constant 0 : index
    %c0_0 = arith.constant 0 : index
    %0 = vector.load %arg4[%c0, %c0_0] : memref<1x128xf32, #tpu.memory_space<vmem>>, vector<1x128xf32>
    %c0_1 = arith.constant 0 : index
    %c0_2 = arith.constant 0 : index
    %1 = vector.load %arg2[%c0_1, %c0_2] : memref<1x128xf32, #tpu.memory_space<vmem>>, vector<1x128xf32>
    %c0_3 = arith.constant 0 : index
    %c0_4 = arith.constant 0 : index
    %2 = vector.load %arg3[%c0_3, %c0_4] : memref<1x128xf32, #tpu.memory_space<vmem>>, vector<1x128xf32>
    %3 = math.log %1 : vector<1x128xf32>
    %cst = arith.constant -1.000000e+02 : f32
    %4 = vector.broadcast %cst : f32 to vector<1x128xf32>
    %5 = arith.maximumf %3, %4 : vector<1x128xf32>
    %cst_5 = arith.constant 0.000000e+00 : f32
    %6 = vector.broadcast %cst_5 : f32 to vector<1x128xf32>
    %7 = arith.subf %6, %1 : vector<1x128xf32>
    %8 = math.log1p %7 : vector<1x128xf32>
    %cst_6 = arith.constant -1.000000e+02 : f32
    %9 = vector.broadcast %cst_6 : f32 to vector<1x128xf32>
    %10 = arith.maximumf %8, %9 : vector<1x128xf32>
    %11 = arith.mulf %2, %5 : vector<1x128xf32>
    %cst_7 = arith.constant 1.000000e+00 : f32
    %12 = vector.broadcast %cst_7 : f32 to vector<1x128xf32>
    %13 = arith.subf %12, %2 : vector<1x128xf32>
    %14 = arith.mulf %13, %10 : vector<1x128xf32>
    %15 = arith.addf %11, %14 : vector<1x128xf32>
    %cst_8 = arith.constant 0.000000e+00 : f32
    %16 = vector.broadcast %cst_8 : f32 to vector<1x128xf32>
    %17 = arith.subf %16, %15 : vector<1x128xf32>
    %18 = arith.mulf %17, %0 : vector<1x128xf32>
    %19 = vector.shape_cast %18 : vector<1x128xf32> to vector<1x1x128xf32>
    %cst_9 = arith.constant dense<0.000000e+00> : vector<1xf32>
    %20 = vector.multi_reduction <add>, %19, %cst_9 [1, 2] : vector<1x1x128xf32> to vector<1xf32>
    %21 = vector.shape_cast %20 : vector<1xf32> to vector<1x1x1xf32>
    %22 = vector.extract %21[0, 0, 0] : f32 from vector<1x1x1xf32>
    %23 = tpu.iota {dimensions = array<i32: 0>} : vector<8x128xi32>
    %24 = tpu.iota {dimensions = array<i32: 1>} : vector<8x128xi32>
    %c0_i32 = arith.constant 0 : i32
    %25 = vector.broadcast %c0_i32 : i32 to vector<8x128xi32>
    %26 = arith.cmpi eq, %23, %25 : vector<8x128xi32>
    %c0_i32_10 = arith.constant 0 : i32
    %27 = vector.broadcast %c0_i32_10 : i32 to vector<8x128xi32>
    %28 = arith.cmpi eq, %24, %27 : vector<8x128xi32>
    %29 = arith.andi %26, %28 : vector<8x128xi1>
    %cst_11 = arith.constant 0.000000e+00 : f32
    %30 = vector.broadcast %22 : f32 to vector<8x128xf32>
    %31 = vector.broadcast %cst_11 : f32 to vector<8x128xf32>
    %32 = arith.select %29, %30, %31 : vector<8x128xi1>, vector<8x128xf32>
    %c0_12 = arith.constant 0 : index
    %c0_13 = arith.constant 0 : index
    %33 = vector.load %arg5[%c0_12, %c0_13] : memref<8x128xf32, #tpu.memory_space<vmem>>, vector<8x128xf32>
    tpu.vector_store %arg5[%c0_12, %c0_13], %32 {strides = array<i32>} : memref<8x128xf32, #tpu.memory_space<vmem>>, vector<8x128xf32>,
    return
  }
  func.func @transform_0(%arg0: i32, %arg1: i32) -> (i32, i32) {
    %c0_i32 = arith.constant 0 : i32
    return %arg0, %arg1 : i32, i32
  }
  func.func @transform_1(%arg0: i32, %arg1: i32) -> (i32, i32) {
    %c0_i32 = arith.constant 0 : i32
    return %arg0, %arg1 : i32, i32
  }
  func.func @transform_2(%arg0: i32, %arg1: i32) -> (i32, i32) {
    %c0_i32 = arith.constant 0 : i32
    return %arg0, %arg1 : i32, i32
  }
  func.func @transform_3(%arg0: i32, %arg1: i32) -> (i32, i32) {
    %c0_i32 = arith.constant 0 : i32
    return %arg0, %arg1 : i32, i32
  }
}

</mosaic_0001>

<llo_original>
// kernel: tpu_custom_call.1
$region0: #{tpu_custom_call.1}
  #allocation0 [shape = 'u32[]', space=smem, size = 0x4, offset = 0x4, fixed_abs, tag = 'smem constant byte address 0x4 - core index']
  #allocation1 [shape = 'u32[72,128]{1,0:T(1,128)}', space=vmem, size = 0x9000, scoped, tag = 'internal scratch']
  %s0 = inlined_call_operand.hbm [shape: f32[1,128], index: 0, kind: input, shape index: {}]
  %s1 = inlined_call_operand.hbm [shape: f32[1,128], index: 1, kind: input, shape index: {}]
  %s2 = inlined_call_operand.vmem [shape: f32[1,128], index: 2, kind: input, shape index: {}]
  %s3 = inlined_call_operand.hbm [shape: f32[8,128], index: 3, kind: output, shape index: {}]
  %s4 = sld [smem:[#allocation0]]
  $region30: #{tpu_custom_call.1} parent=0
    _
  %s6 = ssub.s32 1, %s4
  %s7 = scalar_select 0, %s6, %s4
  $region1: #{tpu_custom_call.1} parent=0
    #allocation2 [shape = 'u8[512]{0}', space=vmem, size = 0x400, scoped, tag = 'input window, operand 0, single buffered']
    #allocation3 [shape = 's32[1]{0}', space=sflag, size = 0x4, scoped, tag = 'scoped memory for tpu_custom_call.1']
    #allocation4 [shape = 's32[1]{0}', space=sflag, size = 0x4, scoped, tag = 'scoped memory for tpu_custom_call.1']
    #allocation5 [shape = 'u8[512]{0}', space=vmem, size = 0x400, scoped, tag = 'input window, operand 1, single buffered']
    #allocation6 [shape = 's32[1]{0}', space=sflag, size = 0x4, scoped, tag = 'scoped memory for tpu_custom_call.1']
    #allocation7 [shape = 'u8[4096]{0}', space=vmem, size = 0x1000, scoped, tag = 'output window, operand 0, single buffered']
    %8 = vsyncpa [#allocation3], 0
    %9 = vsyncpa [#allocation6], 0
    %10 = vsyncpa [#allocation4], 0
    // Predicated region
    $region2: #{tpu_custom_call.1} parent=1 // pred_check
      _
    $region3: #{tpu_custom_call.1} parent=1 // pred_check_branch
      %12 = sbr.rel (0) target = $region5
    $region4: #{tpu_custom_call.1} parent=1 // pred_region
      %14 = vsyncadd [#allocation3], 0
      %s16 = sshll.u32 %s0, 4
      %s17 = int_to_ptr.hbm [resolvable:$true] %s16
      %s18 = sshll.u32 [#allocation2], 4
      %s19 = int_to_ptr.vmem [resolvable:$true] %s18
      %21 = dma.hbm_to_vmem [thread:$0]  %s17, 16, %s19, [#allocation3]
    $region5: #{tpu_custom_call.1} parent=1 // pred_fallthru
      _
    // Predicated region
    $region6: #{tpu_custom_call.1} parent=1 // pred_check
      _
    $region7: #{tpu_custom_call.1} parent=1 // pred_check_branch
      %23 = sbr.rel (0) target = $region9
    $region8: #{tpu_custom_call.1} parent=1 // pred_region
      %25 = vsyncadd [#allocation6], 0
      %s27 = sshll.u32 %s1, 4
      %s28 = int_to_ptr.hbm [resolvable:$true] %s27
      %s29 = sshll.u32 [#allocation5], 4
      %s30 = int_to_ptr.vmem [resolvable:$true] %s29
      %32 = dma.hbm_to_vmem [thread:$0]  %s28, 16, %s30, [#allocation6]
    $region9: #{tpu_custom_call.1} parent=1 // pred_fallthru
      _
    // Predicated region
    $region10: #{tpu_custom_call.1} parent=1 // pred_check
      _
    $region11: #{tpu_custom_call.1} parent=1 // pred_check_branch
      %34 = sbr.rel (0) target = $region13
    $region12: #{tpu_custom_call.1} parent=1 // pred_region
      _
    $region13: #{tpu_custom_call.1} parent=1 // pred_fallthru
      _
    // Predicated region
    $region14: #{tpu_custom_call.1} parent=1 // pred_check
      _
    $region15: #{tpu_custom_call.1} parent=1 // pred_check_branch
      %36 = sbr.rel (0) target = $region17
    $region16: #{tpu_custom_call.1} parent=1 // pred_region
      %38 = dma.done [#allocation3], 16
    $region17: #{tpu_custom_call.1} parent=1 // pred_fallthru
      _
    // Predicated region
    $region18: #{tpu_custom_call.1} parent=1 // pred_check
      _
    $region19: #{tpu_custom_call.1} parent=1 // pred_check_branch
      %40 = sbr.rel (0) target = $region21
    $region20: #{tpu_custom_call.1} parent=1 // pred_region
      %42 = dma.done [#allocation6], 16
    $region21: #{tpu_custom_call.1} parent=1 // pred_fallthru
      _
    %v43 = vld [vmem:[%s2] sm:$0x1]
    %v44 = vld [vmem:[#allocation2] sm:$0x1]
    %v45 = vld [vmem:[#allocation5] sm:$0x1]
    %v46 = vlog2.pop %v44
    %v47 = vmul.f32 %v46, 0.6931472
    %v48 = vmax.f32 %v47, -100.0
    %v49 = vsub.f32 0.0, %v44
    %v50 = vadd.f32 %v49, 1.0
    %v51 = vlog2.pop %v50
    %v52 = vmul.f32 %v51, 0.6931472
    %v53 = vmul.f32 -0.5, %v49
    %v54 = vadd.f32 %v53, 1.0
    %v55 = vmul.f32 %v54, %v49
    %v56 = vand.u32 2147483647, %v49
    %vm57 = vcmp.lt.f32.partialorder %v56, 0.0004427343
    %v58 = vsel %vm57, %v55, %v52
    %v59 = vmax.f32 %v58, -100.0
    %v60 = vmul.f32 %v45, %v48
    %v61 = vsub.f32 1.0, %v45
    %v62 = vmul.f32 %v61, %v59
    %v63 = vadd.f32 %v60, %v62
    %v64 = vsub.f32 0.0, %v63
    %v65 = vmul.f32 %v64, %v43
    %vm66 = vcmask 1040384
    %v67 = vsel %vm66, %v65, 0.0
    %68 = vadd.xlane.f32.xlu0 %v67
    %v69 = vpop.xlane.xlu0 %68
    %v70 = vrot.slane %v69, 4
    %v71 = vadd.f32 %v69, %v70
    %v72 = vrot.slane %v71, 2
    %v73 = vadd.f32 %v71, %v72
    %v74 = vrot.slane %v73, 1
    %v75 = vadd.f32 %v73, %v74
    %s76 = vtos %v75
    %v77 = vlaneseq
    %v78 = vshrl.u32 %v77, 7
    %v79 = vlaneseq
    %v80 = vand.u32 %v79, 127
    %vm81 = vcmp.eq.s32.totalorder %v78, 0
    %vm82 = vcmp.eq.s32.totalorder %v80, 0
    %vm83 = vmand %vm81, %vm82
    %v84 = vstv %s76
    %v85 = vsel %vm83, %v84, 0.0
    %86 = vst [vmem:[#allocation7] sm:$0xff] %v85
    // Predicated region
    $region22: #{tpu_custom_call.1} parent=1 // pred_check
      _
    $region23: #{tpu_custom_call.1} parent=1 // pred_check_branch
      %88 = sbr.rel (0) target = $region25
    $region24: #{tpu_custom_call.1} parent=1 // pred_region
      %90 = vsyncadd [#allocation4], 0
      %s92 = sshll.u32 [#allocation7], 4
      %s93 = int_to_ptr.vmem [resolvable:$true] %s92
      %s94 = sshll.u32 %s3, 4
      %s95 = int_to_ptr.hbm [resolvable:$true] %s94
      %97 = dma.vmem_to_hbm [thread:$0]  %s93, 128, %s95, [#allocation4]
    $region25: #{tpu_custom_call.1} parent=1 // pred_fallthru
      _
    // Predicated region
    $region26: #{tpu_custom_call.1} parent=1 // pred_check
      _
    $region27: #{tpu_custom_call.1} parent=1 // pred_check_branch
      %99 = sbr.rel (0) target = $region29
    $region28: #{tpu_custom_call.1} parent=1 // pred_region
      %101 = dma.done [#allocation4], 128
    $region29: #{tpu_custom_call.1} parent=1 // pred_fallthru
      _
    %102 = vsyncpa [#allocation3], 1
    %103 = vsyncpa [#allocation6], 1
    %104 = vsyncpa [#allocation4], 1

</llo_original>
